<compile_context>
chip_gen: v5e
topology: v5e:2x2
jax: 0.10.0
libtpu: 0.0.40
codegen_flags: <defaults>
</compile_context>

<pallas_src>
import functools
import math

import jax
import jax.numpy as jnp
from jax import lax
from jax.experimental import pallas as pl
from jax.experimental.pallas import tpu as pltpu


def _pick_tile(n, target):
    """Largest tile <= target that divides n, preferring 128- then 8-aligned
    sizes (lane / sublane friendly). Falls back to the full extent."""
    if n <= target:
        return n
    for align in (128, 8):
        t = (target // align) * align
        while t >= align:
            if n % t == 0:
                return t
            t -= align
    return n


# ---------------------------------------------------------------------------
# Kernel A: returns (out, attn).  Tiled over Lq; full Lk per step (the attn
# output forces the full row of probabilities to be produced before writing).
# ---------------------------------------------------------------------------
def _attn_fullk_kernel(*refs, scale, has_mask):
    if has_mask:
        q_ref, k_ref, v_ref, mask_ref, o_ref, a_ref = refs
    else:
        q_ref, k_ref, v_ref, o_ref, a_ref = refs
        mask_ref = None

    q = q_ref[0, 0]          # (tq, D)   input dtype (bf16 / f32)
    k = k_ref[0, 0]          # (Lk, D)
    v = v_ref[0, 0]          # (Lk, D)

    # s = q @ k^T : contract last dims (no explicit transpose), f32 accumulate.
    s = lax.dot_general(q, k, (((1,), (1,)), ((), ())),
                        preferred_element_type=jnp.float32)
    s = s * scale

    if mask_ref is not None:
        s = jnp.where(mask_ref[0, 0] == 0, -1e9, s)

    # Numerically-stable softmax over the full key axis (f32).
    s_max = jnp.max(s, axis=-1, keepdims=True)
    p = jnp.exp(s - s_max)
    inv = pl.reciprocal(jnp.sum(p, axis=-1, keepdims=True), approx=True)
    p = p * inv

    # out = p @ v, feeding p in v's dtype to the MXU.
    o = lax.dot_general(p.astype(v.dtype), v, (((1,), (0,)), ((), ())),
                        preferred_element_type=jnp.float32)

    o_ref[0, 0] = o.astype(o_ref.dtype)
    a_ref[0, 0] = p.astype(a_ref.dtype)


# ---------------------------------------------------------------------------
# Kernel B: flash-style (return_attn=False).  Tiled over Lq AND Lk with
# online-softmax accumulators in VMEM scratch; never materializes Lq x Lk.
# ---------------------------------------------------------------------------
def _flash_kernel(*refs, scale, has_mask):
    if has_mask:
        q_ref, k_ref, v_ref, mask_ref, o_ref, m_sc, l_sc, acc_sc = refs
    else:
        q_ref, k_ref, v_ref, o_ref, m_sc, l_sc, acc_sc = refs
        mask_ref = None

    ki = pl.program_id(3)

    @pl.when(ki == 0)
    def _():
        m_sc[...] = jnp.full(m_sc.shape, -jnp.inf, dtype=m_sc.dtype)
        l_sc[...] = jnp.zeros(l_sc.shape, dtype=l_sc.dtype)
        acc_sc[...] = jnp.zeros(acc_sc.shape, dtype=acc_sc.dtype)

    q = q_ref[0, 0]          # (tq, D)
    k = k_ref[0, 0]          # (tk, D)
    v = v_ref[0, 0]          # (tk, D)

    s = lax.dot_general(q, k, (((1,), (1,)), ((), ())),
                        preferred_element_type=jnp.float32) * scale
    if mask_ref is not None:
        s = jnp.where(mask_ref[0, 0] == 0, -1e9, s)

    m_prev = m_sc[...]
    m_new = jnp.maximum(m_prev, jnp.max(s, axis=-1, keepdims=True))
    alpha = jnp.exp(m_prev - m_new)
    p = jnp.exp(s - m_new)

    l_sc[...] = alpha * l_sc[...] + jnp.sum(p, axis=-1, keepdims=True)
    acc_sc[...] = alpha * acc_sc[...] + lax.dot_general(
        p.astype(v.dtype), v, (((1,), (0,)), ((), ())),
        preferred_element_type=jnp.float32)
    m_sc[...] = m_new

    @pl.when(ki == pl.num_programs(3) - 1)
    def _():
        o_ref[0, 0] = (acc_sc[...]
                       * pl.reciprocal(l_sc[...], approx=True)).astype(o_ref.dtype)


# ---------------------------------------------------------------------------
# Wrapper
# ---------------------------------------------------------------------------
def scaled_dot_product_attention(q, k, v, temperature, mask=None, *,
                                 return_attn=True, block_q=None, block_k=None):
    """Returns (output, attn) matching the PyTorch module.

    If return_attn=False, the flash-style kernel is used (attn is not written
    to HBM at all) and (output, None) is returned.
    """
    B, H, Lq, D = q.shape
    Lk = k.shape[2]
    scale = 1.0 / float(temperature)
    itemsize = jnp.dtype(q.dtype).itemsize

    has_mask = mask is not None
    bcast_b = bcast_h = False
    m4 = None
    if has_mask:
        m4 = jnp.asarray(mask)
        if m4.ndim < 4:
            m4 = m4.reshape((1,) * (4 - m4.ndim) + m4.shape)
        # Only the last two dims are ever materialized by broadcast; the
        # batch/head broadcast is resolved through the BlockSpec index_map.
        if m4.shape[2] != Lq or m4.shape[3] != Lk:
            m4 = jnp.broadcast_to(m4, (m4.shape[0], m4.shape[1], Lq, Lk))
        m4 = m4.astype(jnp.int32)
        bcast_b = (m4.shape[0] == 1)
        bcast_h = (m4.shape[1] == 1)

    tq = _pick_tile(Lq, block_q if block_q is not None else 256)
    nq = Lq // tq

    flops = 4 * B * H * Lq * Lk * D          # two matmuls, 2 flops per MAC
    transcendentals = B * H * Lq * Lk        # exp

    if return_attn:
        in_specs = [
            pl.BlockSpec((1, 1, tq, D), lambda b, h, qi: (b, h, qi, 0)),
            pl.BlockSpec((1, 1, Lk, D), lambda b, h, qi: (b, h, 0, 0)),
            pl.BlockSpec((1, 1, Lk, D), lambda b, h, qi: (b, h, 0, 0)),
        ]
        inputs = [q, k, v]
        if has_mask:
            def mask_imap(b, h, qi):
                return (0 if bcast_b else b, 0 if bcast_h else h, qi, 0)
            in_specs.append(pl.BlockSpec((1, 1, tq, Lk), mask_imap))
            inputs.append(m4)

        out_specs = (
            pl.BlockSpec((1, 1, tq, D), lambda b, h, qi: (b, h, qi, 0)),
            pl.BlockSpec((1, 1, tq, Lk), lambda b, h, qi: (b, h, qi, 0)),
        )
        out_shape = (
            jax.ShapeDtypeStruct((B, H, Lq, D), q.dtype),
            jax.ShapeDtypeStruct((B, H, Lq, Lk), q.dtype),
        )

        block_bytes = itemsize * (2 * tq * D + 2 * Lk * D + tq * Lk)
        if has_mask:
            block_bytes += 4 * tq * Lk
        vmem_limit = int(min(max(2 * block_bytes + (8 << 20), 32 << 20),
                             64 << 20))

        bytes_accessed = (2 * q.nbytes + k.nbytes + v.nbytes
                          + B * H * Lq * Lk * itemsize
                          + (m4.nbytes if has_mask else 0))
        cost = pl.CostEstimate(flops=flops, transcendentals=transcendentals,
                               bytes_accessed=int(bytes_accessed))

        kernel = functools.partial(_attn_fullk_kernel, scale=scale,
                                   has_mask=has_mask)
        out, attn = pl.pallas_call(
            kernel,
            out_shape=out_shape,
            grid=(B, H, nq),
            in_specs=in_specs,
            out_specs=out_specs,
            compiler_params=pltpu.CompilerParams(
                dimension_semantics=("parallel", "parallel", "parallel"),
                vmem_limit_bytes=vmem_limit),
            cost_estimate=cost,
        )(*inputs)
        return out, attn

    # ---- flash path: no attention-probability output ----
    tk = _pick_tile(Lk, block_k if block_k is not None else 512)
    nk = Lk // tk

    in_specs = [
        pl.BlockSpec((1, 1, tq, D), lambda b, h, qi, ki: (b, h, qi, 0)),
        pl.BlockSpec((1, 1, tk, D), lambda b, h, qi, ki: (b, h, ki, 0)),
        pl.BlockSpec((1, 1, tk, D), lambda b, h, qi, ki: (b, h, ki, 0)),
    ]
    inputs = [q, k, v]
    if has_mask:
        def mask_imap(b, h, qi, ki):
            return (0 if bcast_b else b, 0 if bcast_h else h, qi, ki)
        in_specs.append(pl.BlockSpec((1, 1, tq, tk), mask_imap))
        inputs.append(m4)

    out_specs = pl.BlockSpec((1, 1, tq, D), lambda b, h, qi, ki: (b, h, qi, 0))
    out_shape = jax.ShapeDtypeStruct((B, H, Lq, D), q.dtype)

    scratch_shapes = [
        pltpu.VMEM((tq, 1), jnp.float32),    # running max
        pltpu.VMEM((tq, 1), jnp.float32),    # running sum
        pltpu.VMEM((tq, D), jnp.float32),    # output accumulator
    ]

    block_bytes = itemsize * (2 * tq * D + 2 * tk * D)
    if has_mask:
        block_bytes += 4 * tq * tk
    scratch_bytes = 4 * (tq * (2 + D))
    vmem_limit = int(min(max(2 * block_bytes + scratch_bytes + (8 << 20),
                             32 << 20), 64 << 20))

    bytes_accessed = (2 * q.nbytes + k.nbytes + v.nbytes
                      + (m4.nbytes if has_mask else 0))
    cost = pl.CostEstimate(flops=flops, transcendentals=transcendentals,
                           bytes_accessed=int(bytes_accessed))

    kernel = functools.partial(_flash_kernel, scale=scale, has_mask=has_mask)
    out = pl.pallas_call(
        kernel,
        out_shape=out_shape,
        grid=(B, H, nq, nk),
        in_specs=in_specs,
        out_specs=out_specs,
        scratch_shapes=scratch_shapes,
        compiler_params=pltpu.CompilerParams(
            dimension_semantics=("parallel", "parallel", "parallel",
                                 "arbitrary"),
            vmem_limit_bytes=vmem_limit),
        cost_estimate=cost,
    )(*inputs)
    return out, None


# ---------------------------------------------------------------------------
# Pure-JAX reference & self-test
# ---------------------------------------------------------------------------
def _reference(q, k, v, temperature, mask=None):
    s = jnp.einsum("bhqd,bhkd->bhqk", q / temperature, k)
    if mask is not None:
        s = jnp.where(mask == 0, -1e9, s)
    p = jax.nn.softmax(s, axis=-1)
    o = jnp.einsum("bhqk,bhkd->bhqd", p, v)
    return o, p


if __name__ == "__main__":
    B, H, L, D = 2, 4, 8, 32
    temperature = math.sqrt(D)

    key = jax.random.PRNGKey(0)
    kq, kk, kv, km = jax.random.split(key, 4)
    q = jax.random.normal(kq, (B, H, L, D), dtype=jnp.float32)
    k = jax.random.normal(kk, (B, H, L, D), dtype=jnp.float32)
    v = jax.random.normal(kv, (B, H, L, D), dtype=jnp.float32)

    # 1) Default path: (output, attn), matching the PyTorch module.
    out, attn = scaled_dot_product_attention(q, k, v, temperature)
    out = jax.block_until_ready(out)
    attn = jax.block_until_ready(attn)
    ref_o, ref_p = _reference(q, k, v, temperature)
    assert jnp.allclose(out, ref_o, atol=1e-2, rtol=1e-2)
    assert jnp.allclose(attn, ref_p, atol=1e-2, rtol=1e-2)

    # 2) Masked path (masked_fill(mask == 0, -1e9)); mask stays (B,1,L,L).
    mask = (jax.random.uniform(km, (B, 1, L, L)) > 0.3).astype(jnp.int32)
    out_m, attn_m = scaled_dot_product_attention(q, k, v, temperature, mask=mask)
    out_m = jax.block_until_ready(out_m)
    attn_m = jax.block_until_ready(attn_m)
    ref_om, ref_pm = _reference(q, k, v, temperature, mask=mask)
    assert jnp.allclose(out_m, ref_om, atol=1e-2, rtol=1e-2)
    assert jnp.allclose(attn_m, ref_pm, atol=1e-2, rtol=1e-2)

    # 3) Flash path (no attn output) with real Lq/Lk tiling exercised.
    L2 = 256
    k2q, k2k, k2v, k2m = jax.random.split(jax.random.PRNGKey(1), 4)
    q2 = jax.random.normal(k2q, (B, H, L2, D), dtype=jnp.float32)
    k2 = jax.random.normal(k2k, (B, H, L2, D), dtype=jnp.float32)
    v2 = jax.random.normal(k2v, (B, H, L2, D), dtype=jnp.float32)
    out2, attn2 = scaled_dot_product_attention(
        q2, k2, v2, math.sqrt(D), return_attn=False, block_q=128, block_k=128)
    out2 = jax.block_until_ready(out2)
    ref_o2, _ = _reference(q2, k2, v2, math.sqrt(D))
    assert attn2 is None
    assert jnp.allclose(out2, ref_o2, atol=1e-2, rtol=1e-2)

    # 4) Flash path with a broadcastable (B,1,L2,L2) mask.
    mask2 = (jax.random.uniform(k2m, (B, 1, L2, L2)) > 0.3).astype(jnp.int32)
    out3, _ = scaled_dot_product_attention(
        q2, k2, v2, math.sqrt(D), mask=mask2, return_attn=False,
        block_q=128, block_k=128)
    out3 = jax.block_until_ready(out3)
    ref_o3, _ = _reference(q2, k2, v2, math.sqrt(D), mask=mask2)
    assert jnp.allclose(out3, ref_o3, atol=1e-2, rtol=1e-2)

    print("KERNEL_OK")
</pallas_src>

<mosaic_0001>
module attributes {stable_mosaic.version = 11 : i64} {
  func.func @_attn_fullk_kernel(%arg0: i32, %arg1: i32, %arg2: i32, %arg3: memref<1x1x8x32xf32, #tpu.memory_space<vmem>>, %arg4: memref<1x1x8x32xf32, #tpu.memory_space<vmem>>, %arg5: memref<1x1x8x32xf32, #tpu.memory_space<vmem>>, %arg6: memref<1x1x8x32xf32, #tpu.memory_space<vmem>>, %arg7: memref<1x1x8x8xf32, #tpu.memory_space<vmem>>) attributes {dimension_semantics = [#tpu.dimension_semantics<parallel>, #tpu.dimension_semantics<parallel>, #tpu.dimension_semantics<parallel>], iteration_bounds = array<i64: 2, 4, 1>, scalar_prefetch = 0 : i64, scratch_operands = 0 : i64, tpu.core_type = #tpu.core_type<tc>, window_params = [{transform_indices = @transform_0, window_bounds = array<i64: 1, 1, 8, 32>}, {transform_indices = @transform_1, window_bounds = array<i64: 1, 1, 8, 32>}, {transform_indices = @transform_2, window_bounds = array<i64: 1, 1, 8, 32>}, {transform_indices = @transform_3, window_bounds = array<i64: 1, 1, 8, 32>}, {transform_indices = @transform_4, window_bounds = array<i64: 1, 1, 8, 8>}]} {
    %c0 = arith.constant 0 : index
    %c0_0 = arith.constant 0 : index
    %c0_1 = arith.constant 0 : index
    %c0_2 = arith.constant 0 : index
    %0 = vector.load %arg3[%c0, %c0_0, %c0_1, %c0_2] : memref<1x1x8x32xf32, #tpu.memory_space<vmem>>, vector<1x1x8x32xf32>
    %1 = vector.shape_cast %0 : vector<1x1x8x32xf32> to vector<8x32xf32>
    %c0_3 = arith.constant 0 : index
    %c0_4 = arith.constant 0 : index
    %c0_5 = arith.constant 0 : index
    %c0_6 = arith.constant 0 : index
    %2 = vector.load %arg4[%c0_3, %c0_4, %c0_5, %c0_6] : memref<1x1x8x32xf32, #tpu.memory_space<vmem>>, vector<1x1x8x32xf32>
    %3 = vector.shape_cast %2 : vector<1x1x8x32xf32> to vector<8x32xf32>
    %c0_7 = arith.constant 0 : index
    %c0_8 = arith.constant 0 : index
    %c0_9 = arith.constant 0 : index
    %c0_10 = arith.constant 0 : index
    %4 = vector.load %arg5[%c0_7, %c0_8, %c0_9, %c0_10] : memref<1x1x8x32xf32, #tpu.memory_space<vmem>>, vector<1x1x8x32xf32>
    %5 = vector.shape_cast %4 : vector<1x1x8x32xf32> to vector<8x32xf32>
    %cst = arith.constant dense<0.000000e+00> : vector<8x8xf32>
    %6 = tpu.matmul %1, %3, %cst {dimension_numbers = #tpu.dot_dimension_numbers<[1], [1], [0], [0], [0, 0, 1, 0], [], []>} : vector<8x32xf32>, vector<8x32xf32>, vector<8x8xf32> -> vector<8x8xf32>
    %cst_11 = arith.constant 0.176776692 : f32
    %7 = vector.broadcast %cst_11 : f32 to vector<8x8xf32>
    %8 = arith.mulf %6, %7 : vector<8x8xf32>
    %cst_12 = arith.constant dense<0xFF800000> : vector<8xf32>
    %9 = vector.multi_reduction <maximumf>, %8, %cst_12 [1] : vector<8x8xf32> to vector<8xf32>
    %10 = vector.shape_cast %9 : vector<8xf32> to vector<8x1xf32>
    %11 = vector.broadcast %10 : vector<8x1xf32> to vector<8x8xf32>
    %12 = arith.subf %8, %11 : vector<8x8xf32>
    %13 = math.exp %12 : vector<8x8xf32>
    %cst_13 = arith.constant dense<0.000000e+00> : vector<8xf32>
    %14 = vector.multi_reduction <add>, %13, %cst_13 [1] : vector<8x8xf32> to vector<8xf32>
    %15 = vector.shape_cast %14 : vector<8xf32> to vector<8x1xf32>
    %16 = tpu.reciprocal %15 {approx = true} : vector<8x1xf32> -> vector<8x1xf32>
    %17 = vector.broadcast %16 : vector<8x1xf32> to vector<8x8xf32>
    %18 = arith.mulf %13, %17 : vector<8x8xf32>
    %cst_14 = arith.constant dense<0.000000e+00> : vector<8x32xf32>
    %19 = tpu.matmul %18, %5, %cst_14 {dimension_numbers = #tpu.dot_dimension_numbers<[1], [0], [0], [1], [0, 0, 1, 1], [], []>} : vector<8x8xf32>, vector<8x32xf32>, vector<8x32xf32> -> vector<8x32xf32>
    %c0_15 = arith.constant 0 : index
    %c0_16 = arith.constant 0 : index
    %c0_17 = arith.constant 0 : index
    %c0_18 = arith.constant 0 : index
    %20 = vector.load %arg6[%c0_15, %c0_16, %c0_17, %c0_18] : memref<1x1x8x32xf32, #tpu.memory_space<vmem>>, vector<1x1x8x32xf32>
    %21 = vector.shape_cast %20 : vector<1x1x8x32xf32> to vector<8x32xf32>
    %22 = vector.shape_cast %19 : vector<8x32xf32> to vector<1x1x8x32xf32>
    tpu.vector_store %arg6[%c0_15, %c0_16, %c0_17, %c0_18], %22 {strides = array<i32>} : memref<1x1x8x32xf32, #tpu.memory_space<vmem>>, vector<1x1x8x32xf32>,
    %c0_19 = arith.constant 0 : index
    %c0_20 = arith.constant 0 : index
    %c0_21 = arith.constant 0 : index
    %c0_22 = arith.constant 0 : index
    %23 = vector.load %arg7[%c0_19, %c0_20, %c0_21, %c0_22] : memref<1x1x8x8xf32, #tpu.memory_space<vmem>>, vector<1x1x8x8xf32>
    %24 = vector.shape_cast %23 : vector<1x1x8x8xf32> to vector<8x8xf32>
    %25 = vector.shape_cast %18 : vector<8x8xf32> to vector<1x1x8x8xf32>
    tpu.vector_store %arg7[%c0_19, %c0_20, %c0_21, %c0_22], %25 {strides = array<i32>} : memref<1x1x8x8xf32, #tpu.memory_space<vmem>>, vector<1x1x8x8xf32>,
    return
  }
  func.func @transform_0(%arg0: i32, %arg1: i32, %arg2: i32) -> (i32, i32, i32, i32) {
    %c0_i32 = arith.constant 0 : i32
    %c0_i32_0 = arith.constant 0 : i32
    return %arg0, %arg1, %arg2, %c0_i32 : i32, i32, i32, i32
  }
  func.func @transform_1(%arg0: i32, %arg1: i32, %arg2: i32) -> (i32, i32, i32, i32) {
    %c0_i32 = arith.constant 0 : i32
    %c0_i32_0 = arith.constant 0 : i32
    %c0_i32_1 = arith.constant 0 : i32
    return %arg0, %arg1, %c0_i32, %c0_i32_0 : i32, i32, i32, i32
  }
  func.func @transform_2(%arg0: i32, %arg1: i32, %arg2: i32) -> (i32, i32, i32, i32) {
    %c0_i32 = arith.constant 0 : i32
    %c0_i32_0 = arith.constant 0 : i32
    %c0_i32_1 = arith.constant 0 : i32
    return %arg0, %arg1, %c0_i32, %c0_i32_0 : i32, i32, i32, i32
  }
  func.func @transform_3(%arg0: i32, %arg1: i32, %arg2: i32) -> (i32, i32, i32, i32) {
    %c0_i32 = arith.constant 0 : i32
    %c0_i32_0 = arith.constant 0 : i32
    return %arg0, %arg1, %arg2, %c0_i32 : i32, i32, i32, i32
  }
  func.func @transform_4(%arg0: i32, %arg1: i32, %arg2: i32) -> (i32, i32, i32, i32) {
    %c0_i32 = arith.constant 0 : i32
    %c0_i32_0 = arith.constant 0 : i32
    return %arg0, %arg1, %arg2, %c0_i32 : i32, i32, i32, i32
  }
}

</mosaic_0001>

<llo_original>
// kernel: tpu_custom_call.1
$region0: #{tpu_custom_call.1}
  #allocation0 [shape = 'u32[]', space=smem, size = 0x4, offset = 0x4, fixed_abs, tag = 'smem constant byte address 0x4 - core index']
  #allocation1 [shape = 'u32[72,128]{1,0:T(1,128)}', space=vmem, size = 0x9000, scoped, tag = 'internal scratch']
  %s0 = inlined_call_operand.hbm [shape: f32[2,4,8,32], index: 0, kind: input, shape index: {}]
  %s1 = inlined_call_operand.hbm [shape: f32[2,4,8,32], index: 1, kind: input, shape index: {}]
  %s2 = inlined_call_operand.hbm [shape: f32[2,4,8,32], index: 2, kind: input, shape index: {}]
  %s3 = inlined_call_operand.hbm [shape: f32[2,4,8,32], index: 3, kind: output, shape index: {0}]
  %s4 = inlined_call_operand.hbm [shape: f32[2,4,8,8], index: 4, kind: output, shape index: {1}]
  %5 = xla_tuple %s3, %s4
  %s6 = sld [smem:[#allocation0]]
  $region65: #{tpu_custom_call.1} parent=0
    _
  %s8 = ssub.s32 1, %s6
  %s9 = scalar_select 0, %s8, %s6
  $region1: #{tpu_custom_call.1} parent=0
    #allocation2 [shape = 'u8[8192]{0}', space=vmem, size = 0x2000, scoped, tag = 'input window, operand 0']
    #allocation3 [shape = 's32[2]{0}', space=sflag, size = 0x8, scoped, tag = 'scoped memory for tpu_custom_call.1']
    #allocation4 [shape = 's32[2]{0}', space=sflag, size = 0x8, scoped, tag = 'scoped memory for tpu_custom_call.1']
    #allocation5 [shape = 'u8[8192]{0}', space=vmem, size = 0x2000, scoped, tag = 'input window, operand 1']
    #allocation6 [shape = 's32[2]{0}', space=sflag, size = 0x8, scoped, tag = 'scoped memory for tpu_custom_call.1']
    #allocation7 [shape = 'u8[8192]{0}', space=vmem, size = 0x2000, scoped, tag = 'input window, operand 2']
    #allocation8 [shape = 'u8[8192]{0}', space=vmem, size = 0x2000, scoped, tag = 'output window, operand 0']
    #allocation9 [shape = 'u8[8192]{0}', space=vmem, size = 0x2000, scoped, tag = 'output window, operand 1']
    #allocation10 [shape = 's32[2]{0}', space=sflag, size = 0x8, scoped, tag = 'scoped memory for tpu_custom_call.1']
    %10 = vsyncpa [#allocation3], 0
    %s11 = scalar_lea.sflag [#allocation3], 1
    %12 = vsyncpa %s11, 0
    %13 = vsyncpa [#allocation6], 0
    %s14 = scalar_lea.sflag [#allocation6], 1
    %15 = vsyncpa %s14, 0
    %16 = vsyncpa [#allocation4], 0
    %s17 = scalar_lea.sflag [#allocation4], 1
    %18 = vsyncpa %s17, 0
    %19 = vsyncpa [#allocation10], 0
    %s20 = scalar_lea.sflag [#allocation10], 1
    %21 = vsyncpa %s20, 0
    loop: start=0, step=1, limit=10
    $region2: #{tpu_custom_call.1} parent=1 // loop_pre_header
      _
    $region3: #{tpu_custom_call.1} parent=1 // loop_header
      %s23 = sphi 0, %s27
      %p24 = scmp.ge.s32.totalorder %s23, 10
      %s30 = sphi 0, %s49
      %s31 = sphi 0, %s45
      %s32 = sphi 0, %s41
      %s33 = sphi 0, %s30
      %s34 = sphi 0, %s31
      %s35 = sphi 0, %s32
      %s36 = sphi 0, %s33
      %s37 = sphi 0, %s34
      %s38 = sphi 0, %s35
      %s56 = sphi 0, %s58
      %s59 = sphi 0, %s56
      %s60 = sphi 0, %s59
      %s76 = sphi 0, %s60
      %s84 = sphi 0, %s86
      %s87 = sphi 0, %s84
      %s88 = sphi 0, %s87
      %s104 = sphi 0, %s88
      %s112 = sphi 0, %s114
      %s115 = sphi 0, %s112
      %s116 = sphi 0, %s115
      %s132 = sphi 0, %s116
      %s142 = sphi 0, %s144
      %s145 = sphi 0, %s142
      %s146 = sphi 0, %s145
      %s162 = sphi 0, %s146
      %s172 = sphi 0, %s174
      %s175 = sphi 0, %s172
      %s176 = sphi 0, %s175
      %s192 = sphi 0, %s176
    $region4: #{tpu_custom_call.1} parent=1 // loop_header_branch
      %26 = sbr.rel (%p24) target = $region8
    $region5: #{tpu_custom_call.1} parent=1 // loop_body
      %s28 = ssub.s32 %s23, 1
      %s29 = ssub.s32 %s23, 2
      %s39 = sadd.s32 1, %s32
      %p40 = scmp.ge.s32.totalorder %s39, 1
      %s41 = scalar_select %p40, 0, %s39
      %s42 = sadd.s32 1, %s31
      %s43 = scalar_select %p40, %s42, %s31
      %p44 = scmp.ge.s32.totalorder %s43, 4
      %s45 = scalar_select %p44, 0, %s43
      %s46 = sadd.s32 1, %s30
      %s47 = scalar_select %p44, %s46, %s30
      %p48 = scmp.ge.s32.totalorder %s47, 2
      %s49 = scalar_select %p48, 0, %s47
      %s50 = ssub.s32 %s30, %s49
      %s51 = ssub.s32 %s31, %s45
      %s52 = sor.u32 %s50, %s51
      %s53 = ssub.s32 %s32, %s41
      %s54 = sor.u32 %s52, %s53
      %p55 = scmp.eq.s32.totalorder %s54, 0
      %s57 = sadd.s32 %s56, 1
      %s58 = scalar_select %p55, %s56, %s57
      %p61 = pneg %p55
      %p62 = scmp.eq.s32.totalorder %s23, 7
      %p63 = por %p61, %p62
      %p64 = scmp.ne.s32.totalorder %s56, %s59
      %p65 = scmp.eq.s32.totalorder %s23, 0
      %p66 = por %p64, %p65
      %p67 = scmp.ne.s32.totalorder %s56, %s59
      %p68 = scmp.eq.s32.totalorder %s28, 7
      %p69 = por %p67, %p68
      %p70 = scmp.ne.s32.totalorder %s59, %s60
      %p71 = scmp.eq.s32.totalorder %s28, 0
      %p72 = por %p70, %p71
      %p73 = scmp.ne.s32.totalorder %s59, %s60
      %p74 = scmp.eq.s32.totalorder %s29, 7
      %p75 = por %p73, %p74
      %p77 = scmp.ne.s32.totalorder %s60, %s76
      %p78 = scmp.eq.s32.totalorder %s29, 0
      %p79 = por %p77, %p78
      %s80 = ssub.s32 %s30, %s49
      %s81 = ssub.s32 %s31, %s45
      %s82 = sor.u32 %s80, %s81
      %p83 = scmp.eq.s32.totalorder %s82, 0
      %s85 = sadd.s32 %s84, 1
      %s86 = scalar_select %p83, %s84, %s85
      %p89 = pneg %p83
      %p90 = scmp.eq.s32.totalorder %s23, 7
      %p91 = por %p89, %p90
      %p92 = scmp.ne.s32.totalorder %s84, %s87
      %p93 = scmp.eq.s32.totalorder %s23, 0
      %p94 = por %p92, %p93
      %p95 = scmp.ne.s32.totalorder %s84, %s87
      %p96 = scmp.eq.s32.totalorder %s28, 7
      %p97 = por %p95, %p96
      %p98 = scmp.ne.s32.totalorder %s87, %s88
      %p99 = scmp.eq.s32.totalorder %s28, 0
      %p100 = por %p98, %p99
      %p101 = scmp.ne.s32.totalorder %s87, %s88
      %p102 = scmp.eq.s32.totalorder %s29, 7
      %p103 = por %p101, %p102
      %p105 = scmp.ne.s32.totalorder %s88, %s104
      %p106 = scmp.eq.s32.totalorder %s29, 0
      %p107 = por %p105, %p106
      %s108 = ssub.s32 %s30, %s49
      %s109 = ssub.s32 %s31, %s45
      %s110 = sor.u32 %s108, %s109
      %p111 = scmp.eq.s32.totalorder %s110, 0
      %s113 = sadd.s32 %s112, 1
      %s114 = scalar_select %p111, %s112, %s113
      %p117 = pneg %p111
      %p118 = scmp.eq.s32.totalorder %s23, 7
      %p119 = por %p117, %p118
      %p120 = scmp.ne.s32.totalorder %s112, %s115
      %p121 = scmp.eq.s32.totalorder %s23, 0
      %p122 = por %p120, %p121
      %p123 = scmp.ne.s32.totalorder %s112, %s115
      %p124 = scmp.eq.s32.totalorder %s28, 7
      %p125 = por %p123, %p124
      %p126 = scmp.ne.s32.totalorder %s115, %s116
      %p127 = scmp.eq.s32.totalorder %s28, 0
      %p128 = por %p126, %p127
      %p129 = scmp.ne.s32.totalorder %s115, %s116
      %p130 = scmp.eq.s32.totalorder %s29, 7
      %p131 = por %p129, %p130
      %p133 = scmp.ne.s32.totalorder %s116, %s132
      %p134 = scmp.eq.s32.totalorder %s29, 0
      %p135 = por %p133, %p134
      %s136 = ssub.s32 %s30, %s49
      %s137 = ssub.s32 %s31, %s45
      %s138 = sor.u32 %s136, %s137
      %s139 = ssub.s32 %s32, %s41
      %s140 = sor.u32 %s138, %s139
      %p141 = scmp.eq.s32.totalorder %s140, 0
      %s143 = sadd.s32 %s142, 1
      %s144 = scalar_select %p141, %s142, %s143
      %p147 = pneg %p141
      %p148 = scmp.eq.s32.totalorder %s23, 7
      %p149 = por %p147, %p148
      %p150 = scmp.ne.s32.totalorder %s142, %s145
      %p151 = scmp.eq.s32.totalorder %s23, 0
      %p152 = por %p150, %p151
      %p153 = scmp.ne.s32.totalorder %s142, %s145
      %p154 = scmp.eq.s32.totalorder %s28, 7
      %p155 = por %p153, %p154
      %p156 = scmp.ne.s32.totalorder %s145, %s146
      %p157 = scmp.eq.s32.totalorder %s28, 0
      %p158 = por %p156, %p157
      %p159 = scmp.ne.s32.totalorder %s145, %s146
      %p160 = scmp.eq.s32.totalorder %s29, 7
      %p161 = por %p159, %p160
      %p163 = scmp.ne.s32.totalorder %s146, %s162
      %p164 = scmp.eq.s32.totalorder %s29, 0
      %p165 = por %p163, %p164
      %s166 = ssub.s32 %s30, %s49
      %s167 = ssub.s32 %s31, %s45
      %s168 = sor.u32 %s166, %s167
      %s169 = ssub.s32 %s32, %s41
      %s170 = sor.u32 %s168, %s169
      %p171 = scmp.eq.s32.totalorder %s170, 0
      %s173 = sadd.s32 %s172, 1
      %s174 = scalar_select %p171, %s172, %s173
      %p177 = pneg %p171
      %p178 = scmp.eq.s32.totalorder %s23, 7
      %p179 = por %p177, %p178
      %p180 = scmp.ne.s32.totalorder %s172, %s175
      %p181 = scmp.eq.s32.totalorder %s23, 0
      %p182 = por %p180, %p181
      %p183 = scmp.ne.s32.totalorder %s172, %s175
      %p184 = scmp.eq.s32.totalorder %s28, 7
      %p185 = por %p183, %p184
      %p186 = scmp.ne.s32.totalorder %s175, %s176
      %p187 = scmp.eq.s32.totalorder %s28, 0
      %p188 = por %p186, %p187
      %p189 = scmp.ne.s32.totalorder %s175, %s176
      %p190 = scmp.eq.s32.totalorder %s29, 7
      %p191 = por %p189, %p190
      %p193 = scmp.ne.s32.totalorder %s176, %s192
      %p194 = scmp.eq.s32.totalorder %s29, 0
      %p195 = por %p193, %p194
      %p196 = scmp.le.s32.totalorder 1, %s23
      %p197 = scmp.lt.s32.totalorder %s23, 9
      %p198 = pnand %p196, %p197
      %p199 = pneg %p198
      // Predicated region
      $region9: #{tpu_custom_call.1} parent=5 // pred_check
        _
      $region10: #{tpu_custom_call.1} parent=5 // pred_check_branch
        %201 = sbr.rel (%p198) target = $region12
      $region11: #{tpu_custom_call.1} parent=5 // pred_region
        %s202 = ssub.s32 %s23, 1
      $region12: #{tpu_custom_call.1} parent=5 // pred_fallthru
        _
      %p203 = scmp.lt.s32.totalorder %s23, 8
      // Predicated region
      $region13: #{tpu_custom_call.1} parent=5 // pred_check
        %p204 = pneg %p203
      $region14: #{tpu_custom_call.1} parent=5 // pred_check_branch
        %206 = sbr.rel (%p204) target = $region16
      $region15: #{tpu_custom_call.1} parent=5 // pred_region
        // Predicated region
        $region17: #{tpu_custom_call.1} parent=15 // pred_check
          %p207 = pneg %p66
        $region18: #{tpu_custom_call.1} parent=15 // pred_check_branch
          %209 = sbr.rel (%p207) target = $region20
        $region19: #{tpu_custom_call.1} parent=15 // pred_region
          %s210 = sand.u32 %s56, 1
          %s211 = scalar_lea.sflag [#allocation3], %s210
          %s212 = sand.u32 %s56, 1
          %s213 = smul.addr %s212, 8
          %s214 = scalar_lea.vmem [#allocation2], %s213
          %216 = vsyncadd %s211, 0
          %s217 = sadd.s32 %s32, %s31
          %s218 = smul.addr %s30, 4
          %s219 = sadd.s32 %s217, %s218
          %s220 = smul.addr %s219, 8
          %s221 = scalar_lea.hbm %s0, %s220
          %s223 = sshll.u32 %s221, 4
          %s224 = int_to_ptr.hbm [resolvable:$true] %s223
          %s225 = sshll.u32 %s214, 4
          %s226 = int_to_ptr.vmem [resolvable:$true] %s225
          %228 = dma.hbm_to_vmem [thread:$0]  %s224, 128, %s226, %s211
        $region20: #{tpu_custom_call.1} parent=15 // pred_fallthru
          _
        // Predicated region
        $region21: #{tpu_custom_call.1} parent=15 // pred_check
          %p229 = pneg %p94
        $region22: #{tpu_custom_call.1} parent=15 // pred_check_branch
          %231 = sbr.rel (%p229) target = $region24
        $region23: #{tpu_custom_call.1} parent=15 // pred_region
          %s232 = sand.u32 %s23, 1
          %s233 = scalar_lea.sflag [#allocation6], %s232
          %s234 = sand.u32 %s84, 1
          %s235 = smul.addr %s234, 8
          %s236 = scalar_lea.vmem [#allocation5], %s235
          %238 = vsyncadd %s233, 0
          %s239 = smul.addr %s30, 4
          %s240 = sadd.s32 %s31, %s239
          %s241 = smul.addr %s240, 8
          %s242 = scalar_lea.hbm %s1, %s241
          %s244 = sshll.u32 %s242, 4
          %s245 = int_to_ptr.hbm [resolvable:$true] %s244
          %s246 = sshll.u32 %s236, 4
          %s247 = int_to_ptr.vmem [resolvable:$true] %s246
          %249 = dma.hbm_to_vmem [thread:$0]  %s245, 128, %s247, %s233
        $region24: #{tpu_custom_call.1} parent=15 // pred_fallthru
          _
        // Predicated region
        $region25: #{tpu_custom_call.1} parent=15 // pred_check
          %p250 = pneg %p122
        $region26: #{tpu_custom_call.1} parent=15 // pred_check_branch
          %252 = sbr.rel (%p250) target = $region28
        $region27: #{tpu_custom_call.1} parent=15 // pred_region
          %s253 = sand.u32 %s23, 1
          %s254 = scalar_lea.sflag [#allocation6], %s253
          %s255 = sand.u32 %s112, 1
          %s256 = smul.addr %s255, 8
          %s257 = scalar_lea.vmem [#allocation7], %s256
          %259 = vsyncadd %s254, 0
          %s260 = smul.addr %s30, 4
          %s261 = sadd.s32 %s31, %s260
          %s262 = smul.addr %s261, 8
          %s263 = scalar_lea.hbm %s2, %s262
          %s265 = sshll.u32 %s263, 4
          %s266 = int_to_ptr.hbm [resolvable:$true] %s265
          %s267 = sshll.u32 %s257, 4
          %s268 = int_to_ptr.vmem [resolvable:$true] %s267
          %270 = dma.hbm_to_vmem [thread:$0]  %s266, 128, %s268, %s254
        $region28: #{tpu_custom_call.1} parent=15 // pred_fallthru
          _
      $region16: #{tpu_custom_call.1} parent=5 // pred_fallthru
        _
      %p271 = scmp.le.s32.totalorder 1, %s23
      %p272 = scmp.lt.s32.totalorder %s23, 9
      %p273 = pnand %p271, %p272
      %p274 = pneg %p273
      // Predicated region
      $region29: #{tpu_custom_call.1} parent=5 // pred_check
        _
      $region30: #{tpu_custom_call.1} parent=5 // pred_check_branch
        %276 = sbr.rel (%p273) target = $region32
      $region31: #{tpu_custom_call.1} parent=5 // pred_region
        %s277 = ssub.s32 %s23, 1
        %s278 = sand.u32 %s59, 1
        %s279 = scalar_lea.sflag [#allocation3], %s278
        %s280 = sand.u32 %s59, 1
        %s281 = smul.addr %s280, 8
        %s282 = scalar_lea.vmem [#allocation2], %s281
        // Predicated region
        $region33: #{tpu_custom_call.1} parent=31 // pred_check
          %p283 = pneg %p72
        $region34: #{tpu_custom_call.1} parent=31 // pred_check_branch
          %285 = sbr.rel (%p283) target = $region36
        $region35: #{tpu_custom_call.1} parent=31 // pred_region
          %287 = dma.done %s279, 128
        $region36: #{tpu_custom_call.1} parent=31 // pred_fallthru
          _
        %s288 = sand.u32 %s28, 1
        %s289 = scalar_lea.sflag [#allocation6], %s288
        %s290 = sand.u32 %s87, 1
        %s291 = smul.addr %s290, 8
        %s292 = scalar_lea.vmem [#allocation5], %s291
        // Predicated region
        $region37: #{tpu_custom_call.1} parent=31 // pred_check
          %p293 = pneg %p100
        $region38: #{tpu_custom_call.1} parent=31 // pred_check_branch
          %295 = sbr.rel (%p293) target = $region40
        $region39: #{tpu_custom_call.1} parent=31 // pred_region
          %297 = dma.done %s289, 128
        $region40: #{tpu_custom_call.1} parent=31 // pred_fallthru
          _
        %s298 = sand.u32 %s28, 1
        %s299 = scalar_lea.sflag [#allocation6], %s298
        %s300 = sand.u32 %s115, 1
        %s301 = smul.addr %s300, 8
        %s302 = scalar_lea.vmem [#allocation7], %s301
        // Predicated region
        $region41: #{tpu_custom_call.1} parent=31 // pred_check
          %p303 = pneg %p128
        $region42: #{tpu_custom_call.1} parent=31 // pred_check_branch
          %305 = sbr.rel (%p303) target = $region44
        $region43: #{tpu_custom_call.1} parent=31 // pred_region
          %307 = dma.done %s299, 128
        $region44: #{tpu_custom_call.1} parent=31 // pred_fallthru
          _
        %s308 = sand.u32 %s59, 1
        %s309 = scalar_lea.sflag [#allocation3], %s308
        %s310 = sand.u32 %s59, 1
        %s311 = smul.addr %s310, 8
        %s312 = scalar_lea.vmem [#allocation2], %s311
        %p313 = pneg %p72
        %p314 = pneg %p69
        %s315 = sand.u32 %s28, 1
        %s316 = scalar_lea.sflag [#allocation6], %s315
        %s317 = sand.u32 %s87, 1
        %s318 = smul.addr %s317, 8
        %s319 = scalar_lea.vmem [#allocation5], %s318
        %p320 = pneg %p100
        %p321 = pneg %p97
        %s322 = sand.u32 %s28, 1
        %s323 = scalar_lea.sflag [#allocation6], %s322
        %s324 = sand.u32 %s115, 1
        %s325 = smul.addr %s324, 8
        %s326 = scalar_lea.vmem [#allocation7], %s325
        %p327 = pneg %p128
        %p328 = pneg %p125
        %p329 = pneg %p158
        %p330 = pneg %p155
        %s331 = sand.u32 %s145, 1
        %s332 = scalar_lea.sflag [#allocation4], %s331
        %s333 = sand.u32 %s145, 1
        %s334 = smul.addr %s333, 8
        %s335 = scalar_lea.vmem [#allocation8], %s334
        %p336 = pneg %p188
        %p337 = pneg %p185
        %s338 = sand.u32 %s175, 1
        %s339 = scalar_lea.sflag [#allocation10], %s338
        %s340 = sand.u32 %s175, 1
        %s341 = smul.addr %s340, 8
        %s342 = scalar_lea.vmem [#allocation9], %s341
        %v343 = vld [vmem:[%s282] sm:$0xff]
        %v344 = vld [vmem:[%s292] sm:$0xff]
        %v345 = vld [vmem:[%s302] sm:$0xff]
        %vm346 = vcmask 261120
        %v348 = vsel %vm346, %v343, 0
        %v351 = vsel %vm346, %v344, 0
        %353 = vmatpush.xpose.msra.mxu0 0.0
        %354 = vmatpush.xpose.msra.mxu0 0.0
        %355 = vmatpush.xpose.msra.mxu0 0.0
        %356 = vmatpush.xpose.msra.mxu0 0.0
        %357 = vmatpush.xpose.msra.mxu0 0.0
        %358 = vmatpush.xpose.msra.mxu0 0.0
        %359 = vmatpush.xpose.msra.mxu0 0.0
        %360 = vmatpush.xpose.msra.mxu0 0.0
        %361 = vmatpush.xpose.msra.mxu0 0.0
        %362 = vmatpush.xpose.msra.mxu0 0.0
        %363 = vmatpush.xpose.msra.mxu0 0.0
        %364 = vmatpush.xpose.msra.mxu0 0.0
        %365 = vmatpush.xpose.msra.mxu0 0.0
        %366 = vmatpush.xpose.msra.mxu0 0.0
        %367 = vmatpush.xpose.msra.mxu0 0.0
        %368 = vmatpush.xpose.msra.mxu0 %v351
        %369 = vmatmul.f32.gmra.mxu0 %v348
        %v370 = vpop.f32.mrf.mxu0
        %v371 = vadd.f32 0.0, %v370
        %372 = vdwg.mxu0
        %v373 = vmul.f32 %v371, 0.17677669
        %vm374 = vcmask 64512
        %v375 = vsel %vm374, %v373, -inf
        %376 = vmax.xlane.f32.xlu0 %v375
        %v377 = vpop.xlane.xlu0 %376
        %v378 = vsub.f32 %v373, %v377
        %v379 = vmul.f32 %v378, 1.442695
        %v380 = vpow.pop %v379
        %v381 = vsel %vm374, %v380, 0.0
        %382 = vadd.xlane.f32.xlu0 %v381
        %v383 = vpop.xlane.xlu0 %382
        %v384 = vrcp.pop %v383
        %v385 = vmul.f32 %v380, %v384
        %v387 = vsel %vm374, %v385, 0
        %389 = vmatpush.msra.mxu0 0.0
        %390 = vmatpush.msra.mxu0 0.0
        %391 = vmatpush.msra.mxu0 0.0
        %392 = vmatpush.msra.mxu0 0.0
        %393 = vmatpush.msra.mxu0 0.0
        %394 = vmatpush.msra.mxu0 0.0
        %395 = vmatpush.msra.mxu0 0.0
        %396 = vmatpush.msra.mxu0 0.0
        %397 = vmatpush.msra.mxu0 0.0
        %398 = vmatpush.msra.mxu0 0.0
        %399 = vmatpush.msra.mxu0 0.0
        %400 = vmatpush.msra.mxu0 0.0
        %401 = vmatpush.msra.mxu0 0.0
        %402 = vmatpush.msra.mxu0 0.0
        %403 = vmatpush.msra.mxu0 0.0
        %404 = vmatpush.msra.mxu0 %v345
        %405 = vmatmul.f32.gmra.mxu0 %v387
        %v406 = vpop.f32.mrf.mxu0
        %v407 = vadd.f32 0.0, %v406
        %408 = vdwg.mxu0
        %409 = vst.msk [vmem:[%s335] sm:$0xff] %vm346, %v407
        %410 = vst.msk [vmem:[%s342] sm:$0xff] %vm374, %v385
        %s411 = sand.u32 %s145, 1
        %s412 = scalar_lea.sflag [#allocation4], %s411
        %s413 = sand.u32 %s145, 1
        %s414 = smul.addr %s413, 8
        %s415 = scalar_lea.vmem [#allocation8], %s414
        %s416 = sand.u32 %s175, 1
        %s417 = scalar_lea.sflag [#allocation10], %s416
        %s418 = sand.u32 %s175, 1
        %s419 = smul.addr %s418, 8
        %s420 = scalar_lea.vmem [#allocation9], %s419
        // Predicated region
        $region45: #{tpu_custom_call.1} parent=31 // pred_check
          %p421 = pneg %p155
        $region46: #{tpu_custom_call.1} parent=31 // pred_check_branch
          %423 = sbr.rel (%p421) target = $region48
        $region47: #{tpu_custom_call.1} parent=31 // pred_region
          %425 = vsyncadd %s412, 0
          %s426 = sadd.s32 %s35, %s34
          %s427 = smul.addr %s33, 4
          %s428 = sadd.s32 %s426, %s427
          %s429 = smul.addr %s428, 8
          %s430 = scalar_lea.hbm %s3, %s429
          %s432 = sshll.u32 %s415, 4
          %s433 = int_to_ptr.vmem [resolvable:$true] %s432
          %s434 = sshll.u32 %s430, 4
          %s435 = int_to_ptr.hbm [resolvable:$true] %s434
          %437 = dma.vmem_to_hbm [thread:$0]  %s433, 128, %s435, %s412
        $region48: #{tpu_custom_call.1} parent=31 // pred_fallthru
          _
        // Predicated region
        $region49: #{tpu_custom_call.1} parent=31 // pred_check
          %p438 = pneg %p185
        $region50: #{tpu_custom_call.1} parent=31 // pred_check_branch
          %440 = sbr.rel (%p438) target = $region52
        $region51: #{tpu_custom_call.1} parent=31 // pred_region
          %442 = vsyncadd %s417, 0
          %s443 = sadd.s32 %s35, %s34
          %s444 = smul.addr %s33, 4
          %s445 = sadd.s32 %s443, %s444
          %s446 = smul.addr %s445, 8
          %s447 = scalar_lea.hbm %s4, %s446
          %s449 = sshll.u32 %s420, 4
          %s450 = int_to_ptr.vmem [resolvable:$true] %s449
          %s451 = sshll.u32 %s447, 4
          %s452 = int_to_ptr.hbm [resolvable:$true] %s451
          %454 = dma.vmem_to_hbm [thread:$0]  %s450, 128, %s452, %s417
        $region52: #{tpu_custom_call.1} parent=31 // pred_fallthru
          _
      $region32: #{tpu_custom_call.1} parent=5 // pred_fallthru
        _
      %p455 = scmp.le.s32.totalorder 2, %s23
      // Predicated region
      $region53: #{tpu_custom_call.1} parent=5 // pred_check
        %p456 = pneg %p455
      $region54: #{tpu_custom_call.1} parent=5 // pred_check_branch
        %458 = sbr.rel (%p456) target = $region56
      $region55: #{tpu_custom_call.1} parent=5 // pred_region
        %s459 = ssub.s32 %s23, 2
        // Predicated region
        $region57: #{tpu_custom_call.1} parent=55 // pred_check
          %p460 = pneg %p161
        $region58: #{tpu_custom_call.1} parent=55 // pred_check_branch
          %462 = sbr.rel (%p460) target = $region60
        $region59: #{tpu_custom_call.1} parent=55 // pred_region
          %s463 = sand.u32 %s146, 1
          %s464 = scalar_lea.sflag [#allocation4], %s463
          %s465 = sand.u32 %s146, 1
          %s466 = smul.addr %s465, 8
          %s467 = scalar_lea.vmem [#allocation8], %s466
          %469 = dma.done %s464, 128
        $region60: #{tpu_custom_call.1} parent=55 // pred_fallthru
          _
        // Predicated region
        $region61: #{tpu_custom_call.1} parent=55 // pred_check
          %p470 = pneg %p191
        $region62: #{tpu_custom_call.1} parent=55 // pred_check_branch
          %472 = sbr.rel (%p470) target = $region64
        $region63: #{tpu_custom_call.1} parent=55 // pred_region
          %s473 = sand.u32 %s176, 1
          %s474 = scalar_lea.sflag [#allocation10], %s473
          %s475 = sand.u32 %s176, 1
          %s476 = smul.addr %s475, 8
          %s477 = scalar_lea.vmem [#allocation9], %s476
          %479 = dma.done %s474, 128
        $region64: #{tpu_custom_call.1} parent=55 // pred_fallthru
          _
      $region56: #{tpu_custom_call.1} parent=5 // pred_fallthru
        _
    $region6: #{tpu_custom_call.1} parent=1 // loop_footer
      %s27 = sadd.s32 1, %s23
    $region7: #{tpu_custom_call.1} parent=1 // loop_footer_branch
      %22 = sbr.rel target = $region3
    $region8: #{tpu_custom_call.1} parent=1 // loop_exit
      _
    %480 = vsyncpa [#allocation3], 1
    %s481 = scalar_lea.sflag [#allocation3], 1
    %482 = vsyncpa %s481, 1
    %483 = vsyncpa [#allocation6], 1
    %s484 = scalar_lea.sflag [#allocation6], 1
    %485 = vsyncpa %s484, 1
    %486 = vsyncpa [#allocation4], 1
    %s487 = scalar_lea.sflag [#allocation4], 1
    %488 = vsyncpa %s487, 1
    %489 = vsyncpa [#allocation10], 1
    %s490 = scalar_lea.sflag [#allocation10], 1
    %491 = vsyncpa %s490, 1

</llo_original>
